<compile_context>
chip_gen: v7x
topology: tpu7x:2x2x1
jax: 0.10.0
libtpu: 0.0.40
codegen_flags: <defaults>
</compile_context>

<pallas_src>
import jax
import jax.numpy as jnp
from jax import lax
from jax.experimental import pallas as pl
from jax.experimental.pallas import tpu as pltpu

LN_EPS = 1e-5  # torch_geometric.nn.LayerNorm default eps


def _round_up(x, m):
    return (x + m - 1) // m * m


# ----------------------------- Pallas kernel --------------------------------
def gcn_fused_kernel(n_ref, fdim_ref, alpha_ref,               # SMEM scalars
                     x0_ref, a_ref, w_ref, b_ref, g_ref, bt_ref,   # VMEM inputs
                     o_ref,                                     # output / activation carry
                     xw_ref, hpre_ref, s1_ref, s2_ref):         # VMEM scratch
    l = pl.program_id(0)                 # layer index   (outer, "arbitrary")
    r = pl.program_id(1)                 # row-tile index (inner, "arbitrary")
    last_r = pl.num_programs(1) - 1
    tm = a_ref.shape[0]                  # rows per tile (multiple of 8)

    # ---- layer prologue: once per layer (first row tile) -------------------
    @pl.when(r == 0)
    def _prologue():
        s1_ref[...] = jnp.zeros_like(s1_ref)
        s2_ref[...] = jnp.zeros_like(s2_ref)

        @pl.when(l == 0)
        def _():
            # Seed the activation carry buffer with the (padded) node features.
            o_ref[...] = x0_ref[...]

        # Feature transform once per layer:  XW = H @ W_l  (bf16 MXU, f32 acc).
        xw_ref[...] = jnp.dot(
            o_ref[...].astype(jnp.bfloat16), w_ref[0],
            preferred_element_type=jnp.float32).astype(jnp.bfloat16)

    # ---- aggregation for this row tile:  h = A_hat[rows] @ XW + bias -------
    row0 = pl.multiple_of(r * tm, 8)
    h = jnp.dot(a_ref[...], xw_ref[...],
                preferred_element_type=jnp.float32) + b_ref[0]
    hpre_ref[pl.ds(row0, tm), :] = h

    # Single-pass masked stats for the graph-wide LayerNorm (padded rows would
    # otherwise contribute the bias; padded feature columns are exactly zero).
    rows = lax.broadcasted_iota(jnp.int32, h.shape, 0) + r * tm
    hm = jnp.where(rows < n_ref[0], h, 0.0)
    s1_ref[...] += jnp.sum(hm, keepdims=True)
    s2_ref[...] += jnp.sum(hm * hm, keepdims=True)

    # ---- layer epilogue: graph LayerNorm + affine + PReLU over all rows ----
    @pl.when(r == last_r)
    def _epilogue():
        cnt = (n_ref[0] * fdim_ref[l]).astype(jnp.float32)   # real N * real F_out
        mean = s1_ref[...] / cnt                             # (1, 1)
        var = jnp.maximum(s2_ref[...] / cnt - mean * mean, 0.0)
        # PyG graph-mode LayerNorm: (x - mean) / (std + eps).  Scalar per layer,
        # so an exact divide is free; no need for the approximate reciprocal.
        inv = 1.0 / (jnp.sqrt(var) + LN_EPS)
        hn = (hpre_ref[...] - mean) * inv                    # broadcast (1,1)
        hn = hn * g_ref[0] + bt_ref[0]
        alpha = alpha_ref[l]
        o_ref[...] = jnp.where(hn > 0, hn, alpha * hn)       # PReLU


# ------------------------------- JAX glue ------------------------------------
def gcn_norm_dense(edge_index, num_nodes):
    """Dense D^-1/2 (A + I) D^-1/2 matching PyG gcn_norm (add_self_loops=True).
    Duplicate edges accumulate (scatter-add semantics), matching PyG."""
    src, dst = edge_index[0], edge_index[1]
    loop = jnp.arange(num_nodes, dtype=edge_index.dtype)
    src = jnp.concatenate([src, loop])
    dst = jnp.concatenate([dst, loop])
    ew = jnp.ones(src.shape[0], jnp.float32)
    deg = jnp.zeros((num_nodes,), jnp.float32).at[dst].add(ew)
    dinv = jnp.where(deg > 0, 1.0 / jnp.sqrt(deg), 0.0)
    norm = dinv[src] * ew * dinv[dst]
    # aggregation out[dst] += norm * x[src]  ->  A_hat[dst, src] = norm
    return jnp.zeros((num_nodes, num_nodes), jnp.float32).at[dst, src].add(norm)


def init_gcn_params(key, layer_sizes):
    """Glorot-uniform conv weights, zero bias, LN gamma=1 / beta=0, PReLU 0.25."""
    params = []
    for in_dim, out_dim in zip(layer_sizes[:-1], layer_sizes[1:]):
        key, sub = jax.random.split(key)
        limit = jnp.sqrt(6.0 / (in_dim + out_dim))
        w = jax.random.uniform(sub, (out_dim, in_dim), jnp.float32, -limit, limit)
        b = jnp.zeros((out_dim,), jnp.float32)
        gamma = jnp.ones((out_dim,), jnp.float32)
        beta = jnp.zeros((out_dim,), jnp.float32)
        alpha = jnp.float32(0.25)
        params.append((w, b, gamma, beta, alpha))
    return params


def _standardize(w):
    var = jnp.var(w, axis=1, keepdims=True)
    mean = jnp.mean(w, axis=1, keepdims=True)
    return (w - mean) / jnp.sqrt(var + 1e-5)


def gcn_forward(x, edge_index, params, weight_standardization=False):
    n, f_in0 = x.shape
    num_layers = len(params)
    f_outs = [w.shape[0] for (w, _, _, _, _) in params]
    f_pad = _round_up(max([f_in0] + f_outs), 128)          # lane-dense features

    # Row padding / tiling: keep A_hat fully VMEM-resident across layers when it
    # fits (<= ~8 MiB bf16, x2 double buffer), otherwise stream 256-row blocks.
    n_pad = _round_up(max(n, 8), 8)
    if n_pad <= 2048:
        tm = n_pad
    else:
        tm = 256
        n_pad = _round_up(n, tm)
    num_row_tiles = n_pad // tm

    # Dense normalized adjacency, zero-padded, bf16 for the MXU.
    a_hat = gcn_norm_dense(edge_index, n)
    a_hat = jnp.pad(a_hat, ((0, n_pad - n), (0, n_pad - n))).astype(jnp.bfloat16)

    x0 = jnp.pad(x.astype(jnp.float32), ((0, n_pad - n), (0, f_pad - f_in0)))

    # Stack per-layer parameters, lane-padded with zeros (keeps math exact).
    wt_l, b_l, g_l, bt_l, al_l = [], [], [], [], []
    for i, (w, b, gamma, beta, alpha) in enumerate(params):
        w = w.astype(jnp.float32)
        if weight_standardization and i > 0:   # standardize_weights skips 1st conv
            w = _standardize(w)
        fo, fi = w.shape
        wt = jnp.zeros((f_pad, f_pad), jnp.float32).at[:fi, :fo].set(w.T)
        wt_l.append(wt.astype(jnp.bfloat16))
        b_l.append(jnp.zeros((f_pad,), jnp.float32).at[:fo].set(b.astype(jnp.float32)))
        g_l.append(jnp.zeros((f_pad,), jnp.float32).at[:fo].set(gamma.astype(jnp.float32)))
        bt_l.append(jnp.zeros((f_pad,), jnp.float32).at[:fo].set(beta.astype(jnp.float32)))
        al_l.append(jnp.asarray(alpha, jnp.float32))
    w_stack = jnp.stack(wt_l)                     # (L, f_pad, f_pad) bf16
    b_stack = jnp.stack(b_l)[:, None, :]          # (L, 1, f_pad)   f32
    g_stack = jnp.stack(g_l)[:, None, :]
    bt_stack = jnp.stack(bt_l)[:, None, :]
    alpha_arr = jnp.stack(al_l)                   # (L,) f32
    n_arr = jnp.array([n], jnp.int32)
    fdim_arr = jnp.array(f_outs, jnp.int32)       # real F_out per layer

    out = pl.pallas_call(
        gcn_fused_kernel,
        out_shape=jax.ShapeDtypeStruct((n_pad, f_pad), jnp.float32),
        grid=(num_layers, num_row_tiles),
        in_specs=[
            pl.BlockSpec(memory_space=pltpu.MemorySpace.SMEM),          # n (real)
            pl.BlockSpec(memory_space=pltpu.MemorySpace.SMEM),          # real F_out per layer
            pl.BlockSpec(memory_space=pltpu.MemorySpace.SMEM),          # PReLU alphas
            pl.BlockSpec((n_pad, f_pad), lambda l, r: (0, 0)),          # x0 (resident)
            pl.BlockSpec((tm, n_pad), lambda l, r: (r, 0)),             # A_hat row block
            pl.BlockSpec((1, f_pad, f_pad), lambda l, r: (l, 0, 0)),    # W^T per layer
            pl.BlockSpec((1, 1, f_pad), lambda l, r: (l, 0, 0)),        # bias
            pl.BlockSpec((1, 1, f_pad), lambda l, r: (l, 0, 0)),        # ln gamma
            pl.BlockSpec((1, 1, f_pad), lambda l, r: (l, 0, 0)),        # ln beta
        ],
        # Constant block index -> output stays resident in VMEM and doubles as
        # the layer-to-layer activation buffer; single HBM writeback at the end.
        out_specs=pl.BlockSpec((n_pad, f_pad), lambda l, r: (0, 0)),
        scratch_shapes=[
            pltpu.VMEM((n_pad, f_pad), jnp.bfloat16),   # XW for current layer
            pltpu.VMEM((n_pad, f_pad), jnp.float32),    # pre-norm conv output
            pltpu.VMEM((1, 1), jnp.float32),            # running sum
            pltpu.VMEM((1, 1), jnp.float32),            # running sum of squares
        ],
        compiler_params=pltpu.CompilerParams(
            # Both axes carry sequential state (activation carry + LN stats).
            dimension_semantics=("arbitrary", "arbitrary"),
            vmem_limit_bytes=32 * 1024 * 1024,
        ),
    )(n_arr, fdim_arr, alpha_arr, x0, a_hat, w_stack, b_stack, g_stack, bt_stack)

    return out[:n, :f_outs[-1]]


# Pure-JAX reference mirroring the kernel's precision choices (bf16 MXU
# operands, f32 accumulation) so the tolerance check is tight and meaningful.
def gcn_forward_ref(x, edge_index, params, weight_standardization=False):
    n = x.shape[0]
    a_hat = gcn_norm_dense(edge_index, n).astype(jnp.bfloat16)
    h = x.astype(jnp.float32)
    for i, (w, b, gamma, beta, alpha) in enumerate(params):
        w = w.astype(jnp.float32)
        if weight_standardization and i > 0:
            w = _standardize(w)
        xw = jnp.dot(h.astype(jnp.bfloat16), w.T.astype(jnp.bfloat16),
                     preferred_element_type=jnp.float32).astype(jnp.bfloat16)
        h = jnp.dot(a_hat, xw, preferred_element_type=jnp.float32) + b
        mean = jnp.mean(h)
        var = jnp.mean((h - mean) ** 2)                       # unbiased=False
        h = (h - mean) / (jnp.sqrt(var) + LN_EPS) * gamma + beta
        h = jnp.where(h > 0, h, alpha * h)
    return h


# --------------------------------- main ---------------------------------------
if __name__ == "__main__":
    key = jax.random.PRNGKey(0)
    k_x, k_e, k_p = jax.random.split(key, 3)

    num_nodes = 32
    num_edges = 64
    layer_sizes = [16, 32, 8]          # GCN(layer_sizes, layernorm=True)

    x = jax.random.normal(k_x, (num_nodes, layer_sizes[0]), jnp.float32)
    edge_index = jax.random.randint(k_e, (2, num_edges), 0, num_nodes,
                                    dtype=jnp.int32)
    params = init_gcn_params(k_p, layer_sizes)

    out = jax.block_until_ready(gcn_forward(x, edge_index, params))
    ref = jax.block_until_ready(gcn_forward_ref(x, edge_index, params))

    assert out.shape == (num_nodes, layer_sizes[-1])
    assert jnp.allclose(out, ref, rtol=5e-3, atol=5e-3), "mismatch vs reference"

    print("KERNEL_OK")
</pallas_src>

<mosaic_0001>
module attributes {stable_mosaic.version = 11 : i64} {
  func.func @gcn_fused_kernel(%arg0: i32, %arg1: i32, %arg2: memref<1xi32, #tpu.memory_space<smem>>, %arg3: memref<2xi32, #tpu.memory_space<smem>>, %arg4: memref<2xf32, #tpu.memory_space<smem>>, %arg5: memref<32x128xf32, #tpu.memory_space<vmem>>, %arg6: memref<32x32xbf16, #tpu.memory_space<vmem>>, %arg7: memref<1x128x128xbf16, #tpu.memory_space<vmem>>, %arg8: memref<1x1x128xf32, #tpu.memory_space<vmem>>, %arg9: memref<1x1x128xf32, #tpu.memory_space<vmem>>, %arg10: memref<1x1x128xf32, #tpu.memory_space<vmem>>, %arg11: memref<32x128xf32, #tpu.memory_space<vmem>>, %arg12: memref<32x128xbf16, #tpu.memory_space<vmem>>, %arg13: memref<32x128xf32, #tpu.memory_space<vmem>>, %arg14: memref<1x1xf32, #tpu.memory_space<vmem>>, %arg15: memref<1x1xf32, #tpu.memory_space<vmem>>) attributes {dimension_semantics = [#tpu.dimension_semantics<arbitrary>, #tpu.dimension_semantics<arbitrary>], iteration_bounds = array<i64: 2, 1>, scalar_prefetch = 0 : i64, scratch_operands = 4 : i64, tpu.core_type = #tpu.core_type<tc>, window_params = [{transform_indices = @transform_0, window_bounds = array<i64: 1>}, {transform_indices = @transform_1, window_bounds = array<i64: 2>}, {transform_indices = @transform_2, window_bounds = array<i64: 2>}, {pipeline_mode = #tpu.pipeline_mode<synchronous>, transform_indices = @transform_3, window_bounds = array<i64: 32, 128>}, {transform_indices = @transform_4, window_bounds = array<i64: 32, 32>}, {transform_indices = @transform_5, window_bounds = array<i64: 1, 128, 128>}, {transform_indices = @transform_6, window_bounds = array<i64: 1, 1, 128>}, {transform_indices = @transform_7, window_bounds = array<i64: 1, 1, 128>}, {transform_indices = @transform_8, window_bounds = array<i64: 1, 1, 128>}, {pipeline_mode = #tpu.pipeline_mode<synchronous>, transform_indices = @transform_9, window_bounds = array<i64: 32, 128>}]} {
    %c0_i32 = arith.constant 0 : i32
    %0 = arith.cmpi eq, %arg1, %c0_i32 : i32
    %1 = arith.extui %0 : i1 to i32
    %c0_i32_0 = arith.constant 0 : i32
    %2 = arith.cmpi ne, %1, %c0_i32_0 : i32
    scf.if %2 {
      %cst_23 = arith.constant 0.000000e+00 : f32
      %43 = vector.broadcast %cst_23 : f32 to vector<1x1xf32>
      %c0_24 = arith.constant 0 : index
      %c0_25 = arith.constant 0 : index
      %44 = vector.load %arg14[%c0_24, %c0_25] : memref<1x1xf32, #tpu.memory_space<vmem>>, vector<1x1xf32>
      tpu.vector_store %arg14[%c0_24, %c0_25], %43 {strides = array<i32>} : memref<1x1xf32, #tpu.memory_space<vmem>>, vector<1x1xf32>,
      %cst_26 = arith.constant 0.000000e+00 : f32
      %45 = vector.broadcast %cst_26 : f32 to vector<1x1xf32>
      %c0_27 = arith.constant 0 : index
      %c0_28 = arith.constant 0 : index
      %46 = vector.load %arg15[%c0_27, %c0_28] : memref<1x1xf32, #tpu.memory_space<vmem>>, vector<1x1xf32>
      tpu.vector_store %arg15[%c0_27, %c0_28], %45 {strides = array<i32>} : memref<1x1xf32, #tpu.memory_space<vmem>>, vector<1x1xf32>,
      %c0_i32_29 = arith.constant 0 : i32
      %47 = arith.cmpi eq, %arg0, %c0_i32_29 : i32
      %48 = arith.extui %47 : i1 to i32
      %c0_i32_30 = arith.constant 0 : i32
      %49 = arith.cmpi ne, %48, %c0_i32_30 : i32
      scf.if %49 {
        %c0_39 = arith.constant 0 : index
        %c0_40 = arith.constant 0 : index
        %57 = vector.load %arg5[%c0_39, %c0_40] : memref<32x128xf32, #tpu.memory_space<vmem>>, vector<32x128xf32>
        %c0_41 = arith.constant 0 : index
        %c0_42 = arith.constant 0 : index
        %58 = vector.load %arg11[%c0_41, %c0_42] : memref<32x128xf32, #tpu.memory_space<vmem>>, vector<32x128xf32>
        tpu.vector_store %arg11[%c0_41, %c0_42], %57 {strides = array<i32>} : memref<32x128xf32, #tpu.memory_space<vmem>>, vector<32x128xf32>,
      } else {
      }
      %c0_31 = arith.constant 0 : index
      %c0_32 = arith.constant 0 : index
      %50 = vector.load %arg11[%c0_31, %c0_32] : memref<32x128xf32, #tpu.memory_space<vmem>>, vector<32x128xf32>
      %51 = arith.truncf %50 : vector<32x128xf32> to vector<32x128xbf16>
      %c0_33 = arith.constant 0 : index
      %c0_34 = arith.constant 0 : index
      %c0_35 = arith.constant 0 : index
      %52 = vector.load %arg7[%c0_33, %c0_34, %c0_35] : memref<1x128x128xbf16, #tpu.memory_space<vmem>>, vector<1x128x128xbf16>
      %53 = vector.shape_cast %52 : vector<1x128x128xbf16> to vector<128x128xbf16>
      %cst_36 = arith.constant dense<0.000000e+00> : vector<32x128xf32>
      %54 = tpu.matmul %51, %53, %cst_36 {dimension_numbers = #tpu.dot_dimension_numbers<[1], [0], [0], [1], [0, 0, 1, 1], [], []>} : vector<32x128xbf16>, vector<128x128xbf16>, vector<32x128xf32> -> vector<32x128xf32>
      %55 = arith.truncf %54 : vector<32x128xf32> to vector<32x128xbf16>
      %c0_37 = arith.constant 0 : index
      %c0_38 = arith.constant 0 : index
      %56 = vector.load %arg12[%c0_37, %c0_38] : memref<32x128xbf16, #tpu.memory_space<vmem>>, vector<32x128xbf16>
      tpu.vector_store %arg12[%c0_37, %c0_38], %55 {strides = array<i32>} : memref<32x128xbf16, #tpu.memory_space<vmem>>, vector<32x128xbf16>,
    } else {
    }
    %c32_i32 = arith.constant 32 : i32
    %3 = arith.muli %arg1, %c32_i32 : i32
    %4 = tpu.assume_multiple %3, 8 : i32
    %c0 = arith.constant 0 : index
    %c0_1 = arith.constant 0 : index
    %5 = vector.load %arg6[%c0, %c0_1] : memref<32x32xbf16, #tpu.memory_space<vmem>>, vector<32x32xbf16>
    %c0_2 = arith.constant 0 : index
    %c0_3 = arith.constant 0 : index
    %6 = vector.load %arg12[%c0_2, %c0_3] : memref<32x128xbf16, #tpu.memory_space<vmem>>, vector<32x128xbf16>
    %cst = arith.constant dense<0.000000e+00> : vector<32x128xf32>
    %7 = tpu.matmul %5, %6, %cst {dimension_numbers = #tpu.dot_dimension_numbers<[1], [0], [0], [1], [0, 0, 1, 1], [], []>} : vector<32x32xbf16>, vector<32x128xbf16>, vector<32x128xf32> -> vector<32x128xf32>
    %c0_4 = arith.constant 0 : index
    %c0_5 = arith.constant 0 : index
    %c0_6 = arith.constant 0 : index
    %8 = vector.load %arg8[%c0_4, %c0_5, %c0_6] : memref<1x1x128xf32, #tpu.memory_space<vmem>>, vector<1x1x128xf32>
    %9 = vector.shape_cast %8 : vector<1x1x128xf32> to vector<1x128xf32>
    %10 = vector.broadcast %9 : vector<1x128xf32> to vector<32x128xf32>
    %11 = arith.addf %7, %10 : vector<32x128xf32>
    %12 = arith.index_cast %4 : i32 to index
    %c0_7 = arith.constant 0 : index
    %13 = vector.load %arg13[%12, %c0_7] : memref<32x128xf32, #tpu.memory_space<vmem>>, vector<32x128xf32>
    tpu.vector_store %arg13[%12, %c0_7], %11 {strides = array<i32>} : memref<32x128xf32, #tpu.memory_space<vmem>>, vector<32x128xf32>,
    %14 = tpu.iota {dimensions = array<i32: 0>} : vector<32x128xi32>
    %c32_i32_8 = arith.constant 32 : i32
    %15 = arith.muli %arg1, %c32_i32_8 : i32
    %16 = vector.broadcast %15 : i32 to vector<32x128xi32>
    %17 = arith.addi %14, %16 : vector<32x128xi32>
    %c0_9 = arith.constant 0 : index
    %18 = memref.load %arg2[%c0_9] : memref<1xi32, #tpu.memory_space<smem>>
    %19 = vector.broadcast %18 : i32 to vector<32x128xi32>
    %20 = arith.cmpi slt, %17, %19 : vector<32x128xi32>
    %cst_10 = arith.constant 0.000000e+00 : f32
    %21 = vector.broadcast %cst_10 : f32 to vector<32x128xf32>
    %22 = arith.select %20, %11, %21 : vector<32x128xi1>, vector<32x128xf32>
    %c0_11 = arith.constant 0 : index
    %c0_12 = arith.constant 0 : index
    %23 = vector.load %arg14[%c0_11, %c0_12] : memref<1x1xf32, #tpu.memory_space<vmem>>, vector<1x1xf32>
    %24 = vector.shape_cast %22 : vector<32x128xf32> to vector<1x32x128xf32>
    %cst_13 = arith.constant dense<0.000000e+00> : vector<1xf32>
    %25 = vector.multi_reduction <add>, %24, %cst_13 [1, 2] : vector<1x32x128xf32> to vector<1xf32>
    %26 = vector.shape_cast %25 : vector<1xf32> to vector<1x1x1xf32>
    %27 = vector.extract %26[0, 0, 0] : f32 from vector<1x1x1xf32>
    %28 = vector.broadcast %27 : f32 to vector<1x1xf32>
    %29 = arith.addf %23, %28 : vector<1x1xf32>
    %c0_14 = arith.constant 0 : index
    %c0_15 = arith.constant 0 : index
    %30 = vector.load %arg14[%c0_14, %c0_15] : memref<1x1xf32, #tpu.memory_space<vmem>>, vector<1x1xf32>
    tpu.vector_store %arg14[%c0_14, %c0_15], %29 {strides = array<i32>} : memref<1x1xf32, #tpu.memory_space<vmem>>, vector<1x1xf32>,
    %c0_16 = arith.constant 0 : index
    %c0_17 = arith.constant 0 : index
    %31 = vector.load %arg15[%c0_16, %c0_17] : memref<1x1xf32, #tpu.memory_space<vmem>>, vector<1x1xf32>
    %32 = arith.mulf %22, %22 : vector<32x128xf32>
    %33 = vector.shape_cast %32 : vector<32x128xf32> to vector<1x32x128xf32>
    %cst_18 = arith.constant dense<0.000000e+00> : vector<1xf32>
    %34 = vector.multi_reduction <add>, %33, %cst_18 [1, 2] : vector<1x32x128xf32> to vector<1xf32>
    %35 = vector.shape_cast %34 : vector<1xf32> to vector<1x1x1xf32>
    %36 = vector.extract %35[0, 0, 0] : f32 from vector<1x1x1xf32>
    %37 = vector.broadcast %36 : f32 to vector<1x1xf32>
    %38 = arith.addf %31, %37 : vector<1x1xf32>
    %c0_19 = arith.constant 0 : index
    %c0_20 = arith.constant 0 : index
    %39 = vector.load %arg15[%c0_19, %c0_20] : memref<1x1xf32, #tpu.memory_space<vmem>>, vector<1x1xf32>
    tpu.vector_store %arg15[%c0_19, %c0_20], %38 {strides = array<i32>} : memref<1x1xf32, #tpu.memory_space<vmem>>, vector<1x1xf32>,
    %c0_i32_21 = arith.constant 0 : i32
    %40 = arith.cmpi eq, %arg1, %c0_i32_21 : i32
    %41 = arith.extui %40 : i1 to i32
    %c0_i32_22 = arith.constant 0 : i32
    %42 = arith.cmpi ne, %41, %c0_i32_22 : i32
    scf.if %42 {
      %c0_23 = arith.constant 0 : index
      %43 = memref.load %arg2[%c0_23] : memref<1xi32, #tpu.memory_space<smem>>
      %44 = arith.index_cast %arg0 : i32 to index
      %45 = memref.load %arg3[%44] : memref<2xi32, #tpu.memory_space<smem>>
      %46 = arith.muli %43, %45 : i32
      %47 = arith.sitofp %46 : i32 to f32
      %c0_24 = arith.constant 0 : index
      %c0_25 = arith.constant 0 : index
      %48 = vector.load %arg14[%c0_24, %c0_25] : memref<1x1xf32, #tpu.memory_space<vmem>>, vector<1x1xf32>
      %49 = vector.broadcast %47 : f32 to vector<1x1xf32>
      %50 = arith.divf %48, %49 : vector<1x1xf32>
      %c0_26 = arith.constant 0 : index
      %c0_27 = arith.constant 0 : index
      %51 = vector.load %arg15[%c0_26, %c0_27] : memref<1x1xf32, #tpu.memory_space<vmem>>, vector<1x1xf32>
      %52 = vector.broadcast %47 : f32 to vector<1x1xf32>
      %53 = arith.divf %51, %52 : vector<1x1xf32>
      %54 = arith.mulf %50, %50 : vector<1x1xf32>
      %55 = arith.subf %53, %54 : vector<1x1xf32>
      %cst_28 = arith.constant 0.000000e+00 : f32
      %56 = vector.broadcast %cst_28 : f32 to vector<1x1xf32>
      %57 = arith.maximumf %55, %56 : vector<1x1xf32>
      %58 = math.sqrt %57 : vector<1x1xf32>
      %cst_29 = arith.constant 9.99999974E-6 : f32
      %59 = vector.broadcast %cst_29 : f32 to vector<1x1xf32>
      %60 = arith.addf %58, %59 : vector<1x1xf32>
      %cst_30 = arith.constant 1.000000e+00 : f32
      %61 = vector.broadcast %cst_30 : f32 to vector<1x1xf32>
      %62 = arith.divf %61, %60 : vector<1x1xf32>
      %c0_31 = arith.constant 0 : index
      %c0_32 = arith.constant 0 : index
      %63 = vector.load %arg13[%c0_31, %c0_32] : memref<32x128xf32, #tpu.memory_space<vmem>>, vector<32x128xf32>
      %64 = vector.broadcast %50 : vector<1x1xf32> to vector<32x128xf32>
      %65 = arith.subf %63, %64 : vector<32x128xf32>
      %66 = vector.broadcast %62 : vector<1x1xf32> to vector<32x128xf32>
      %67 = arith.mulf %65, %66 : vector<32x128xf32>
      %c0_33 = arith.constant 0 : index
      %c0_34 = arith.constant 0 : index
      %c0_35 = arith.constant 0 : index
      %68 = vector.load %arg9[%c0_33, %c0_34, %c0_35] : memref<1x1x128xf32, #tpu.memory_space<vmem>>, vector<1x1x128xf32>
      %69 = vector.shape_cast %68 : vector<1x1x128xf32> to vector<1x128xf32>
      %70 = vector.broadcast %69 : vector<1x128xf32> to vector<32x128xf32>
      %71 = arith.mulf %67, %70 : vector<32x128xf32>
      %c0_36 = arith.constant 0 : index
      %c0_37 = arith.constant 0 : index
      %c0_38 = arith.constant 0 : index
      %72 = vector.load %arg10[%c0_36, %c0_37, %c0_38] : memref<1x1x128xf32, #tpu.memory_space<vmem>>, vector<1x1x128xf32>
      %73 = vector.shape_cast %72 : vector<1x1x128xf32> to vector<1x128xf32>
      %74 = vector.broadcast %73 : vector<1x128xf32> to vector<32x128xf32>
      %75 = arith.addf %71, %74 : vector<32x128xf32>
      %76 = arith.index_cast %arg0 : i32 to index
      %77 = memref.load %arg4[%76] : memref<2xf32, #tpu.memory_space<smem>>
      %cst_39 = arith.constant 0.000000e+00 : f32
      %78 = vector.broadcast %cst_39 : f32 to vector<32x128xf32>
      %79 = arith.cmpf ogt, %75, %78 : vector<32x128xf32>
      %80 = vector.broadcast %77 : f32 to vector<32x128xf32>
      %81 = arith.mulf %80, %75 : vector<32x128xf32>
      %82 = arith.select %79, %75, %81 : vector<32x128xi1>, vector<32x128xf32>
      %c0_40 = arith.constant 0 : index
      %c0_41 = arith.constant 0 : index
      %83 = vector.load %arg11[%c0_40, %c0_41] : memref<32x128xf32, #tpu.memory_space<vmem>>, vector<32x128xf32>
      tpu.vector_store %arg11[%c0_40, %c0_41], %82 {strides = array<i32>} : memref<32x128xf32, #tpu.memory_space<vmem>>, vector<32x128xf32>,
    } else {
    }
    return
  }
  func.func @transform_0(%arg0: i32, %arg1: i32) -> i32 {
    %c0_i32 = arith.constant 0 : i32
    %c0_i32_0 = arith.constant 0 : i32
    return %c0_i32 : i32
  }
  func.func @transform_1(%arg0: i32, %arg1: i32) -> i32 {
    %c0_i32 = arith.constant 0 : i32
    %c0_i32_0 = arith.constant 0 : i32
    return %c0_i32 : i32
  }
  func.func @transform_2(%arg0: i32, %arg1: i32) -> i32 {
    %c0_i32 = arith.constant 0 : i32
    %c0_i32_0 = arith.constant 0 : i32
    return %c0_i32 : i32
  }
  func.func @transform_3(%arg0: i32, %arg1: i32) -> (i32, i32) {
    %c0_i32 = arith.constant 0 : i32
    %c0_i32_0 = arith.constant 0 : i32
    %c0_i32_1 = arith.constant 0 : i32
    return %c0_i32, %c0_i32_0 : i32, i32
  }
  func.func @transform_4(%arg0: i32, %arg1: i32) -> (i32, i32) {
    %c0_i32 = arith.constant 0 : i32
    %c0_i32_0 = arith.constant 0 : i32
    return %arg1, %c0_i32 : i32, i32
  }
  func.func @transform_5(%arg0: i32, %arg1: i32) -> (i32, i32, i32) {
    %c0_i32 = arith.constant 0 : i32
    %c0_i32_0 = arith.constant 0 : i32
    %c0_i32_1 = arith.constant 0 : i32
    return %arg0, %c0_i32, %c0_i32_0 : i32, i32, i32
  }
  func.func @transform_6(%arg0: i32, %arg1: i32) -> (i32, i32, i32) {
    %c0_i32 = arith.constant 0 : i32
    %c0_i32_0 = arith.constant 0 : i32
    %c0_i32_1 = arith.constant 0 : i32
    return %arg0, %c0_i32, %c0_i32_0 : i32, i32, i32
  }
  func.func @transform_7(%arg0: i32, %arg1: i32) -> (i32, i32, i32) {
    %c0_i32 = arith.constant 0 : i32
    %c0_i32_0 = arith.constant 0 : i32
    %c0_i32_1 = arith.constant 0 : i32
    return %arg0, %c0_i32, %c0_i32_0 : i32, i32, i32
  }
  func.func @transform_8(%arg0: i32, %arg1: i32) -> (i32, i32, i32) {
    %c0_i32 = arith.constant 0 : i32
    %c0_i32_0 = arith.constant 0 : i32
    %c0_i32_1 = arith.constant 0 : i32
    return %arg0, %c0_i32, %c0_i32_0 : i32, i32, i32
  }
  func.func @transform_9(%arg0: i32, %arg1: i32) -> (i32, i32) {
    %c0_i32 = arith.constant 0 : i32
    %c0_i32_0 = arith.constant 0 : i32
    %c0_i32_1 = arith.constant 0 : i32
    return %c0_i32, %c0_i32_0 : i32, i32
  }
}

</mosaic_0001>

<llo_original>
// kernel: tpu_custom_call.1
$region0: #{tpu_custom_call.1}
  #allocation0 [shape = 'u32[]', space=smem, size = 0x4, offset = 0x4, fixed_abs, tag = 'smem constant byte address 0x4 - core index']
  #allocation1 [shape = 'u32[144,128]{1,0:T(1,128)}', space=vmem, size = 0x12000, scoped, tag = 'internal scratch']
  #allocation2 [shape = 'bf16[32,128]{1,0:T(16,128)(2,1)}', space=vmem, size = 0x2000, scoped, tag = 'scratch operand']
  #allocation3 [shape = 'f32[32,128]{1,0:T(8,128)}', space=vmem, size = 0x4000, scoped, tag = 'scratch operand']
  #allocation4 [shape = 'f32[1,1]{1,0:T(1,128)}', space=vmem, size = 0x200, scoped, tag = 'scratch operand']
  #allocation5 [shape = 'f32[1,1]{1,0:T(1,128)}', space=vmem, size = 0x200, scoped, tag = 'scratch operand']
  #allocation6 [shape = 's32[1]{0:T(128)S(6)}', space=smem, size = 0x200, scoped, tag = 'scoped memory for tpu_custom_call.1']
  %s0 = inlined_call_operand.<no memory space> [shape: s32[1], index: 0, kind: input, shape index: {}]
  %s1 = inlined_call_operand.vmem [shape: s32[2], index: 1, kind: input, shape index: {}]
  %s2 = inlined_call_operand.hbm [shape: f32[2], index: 2, kind: input, shape index: {}]
  %s3 = inlined_call_operand.hbm [shape: f32[32,128], index: 3, kind: input, shape index: {}]
  %s4 = inlined_call_operand.hbm [shape: bf16[32,32], index: 4, kind: input, shape index: {}]
  %s5 = inlined_call_operand.hbm [shape: bf16[2,128,128], index: 5, kind: input, shape index: {}]
  %s6 = inlined_call_operand.vmem [shape: f32[2,1,128], index: 6, kind: input, shape index: {}]
  %s7 = inlined_call_operand.vmem [shape: f32[2,1,128], index: 7, kind: input, shape index: {}]
  %s8 = inlined_call_operand.vmem [shape: f32[2,1,128], index: 8, kind: input, shape index: {}]
  %s9 = inlined_call_operand.hbm [shape: f32[32,128], index: 9, kind: output, shape index: {}]
  %s10 = sld [smem:[#allocation0]]
  $region101: #{tpu_custom_call.1} parent=0
    _
  %s12 = ssub.s32 1, %s10
  %s13 = scalar_select 0, %s12, %s10
  %14 = sst [smem:[#allocation6]] %s0
  $region1: #{tpu_custom_call.1} parent=0
    #allocation7 [shape = 'u8[512]{0}', space=smem, size = 0x200, scoped, tag = 'input window, operand 1, single buffered']
    #allocation8 [shape = 's32[2]{0}', space=sflag, size = 0x8, scoped, tag = 'scoped memory for tpu_custom_call.1']
    #allocation9 [shape = 's32[2]{0}', space=sflag, size = 0x8, scoped, tag = 'scoped memory for tpu_custom_call.1']
    #allocation10 [shape = 's32[2]{0}', space=sflag, size = 0x8, scoped, tag = 'scoped memory for tpu_custom_call.1']
    #allocation11 [shape = 's32[2]{0}', space=sflag, size = 0x8, scoped, tag = 'scoped memory for tpu_custom_call.1']
    #allocation12 [shape = 'u8[512]{0}', space=smem, size = 0x200, scoped, tag = 'input window, operand 2, single buffered']
    #allocation13 [shape = 'u8[16384]{0}', space=vmem, size = 0x4000, scoped, tag = 'input window, operand 3, single buffered']
    #allocation14 [shape = 'u8[8192]{0}', space=vmem, size = 0x2000, scoped, tag = 'input window, operand 4, single buffered']
    #allocation15 [shape = 's32[1]{0}', space=sflag, size = 0x4, scoped, tag = 'scoped memory for tpu_custom_call.1']
    #allocation16 [shape = 'u8[65536]{0}', space=vmem, size = 0x10000, scoped, tag = 'input window, operand 5']
    #allocation17 [shape = 'u8[16384]{0}', space=vmem, size = 0x4000, scoped, tag = 'output window, operand 0, single buffered']
    %15 = vsyncpa [#allocation11], 0
    %16 = vsyncpa [#allocation10], 0
    %17 = vsyncpa [#allocation8], 0
    %18 = vsyncpa [#allocation15], 0
    %19 = vsyncpa [#allocation9], 0
    loop: start=0, step=1, limit=4
    $region2: #{tpu_custom_call.1} parent=1 // loop_pre_header
      _
    $region3: #{tpu_custom_call.1} parent=1 // loop_header
      %s21 = sphi 0, %s25
      %p22 = scmp.ge.s32.totalorder %s21, 4
      %s28 = sphi 0, %s40
      %s29 = sphi 0, %s36
      %s30 = sphi 0, %s28
      %s31 = sphi 0, %s29
      %s32 = sphi 0, %s30
      %s33 = sphi 0, %s31
      %s41 = sphi 0, %s41
      %s43 = sphi 0, %s41
      %s44 = sphi 0, %s43
      %s58 = sphi 0, %s44
      %s62 = sphi 0, %s62
      %s64 = sphi 0, %s62
      %s65 = sphi 0, %s64
      %s79 = sphi 0, %s65
      %s83 = sphi 0, %s83
      %s85 = sphi 0, %s83
      %s86 = sphi 0, %s85
      %s100 = sphi 0, %s86
      %s104 = sphi 0, %s104
      %s106 = sphi 0, %s104
      %s107 = sphi 0, %s106
      %s121 = sphi 0, %s107
      %s127 = sphi 0, %s129
      %s130 = sphi 0, %s127
      %s131 = sphi 0, %s130
      %s147 = sphi 0, %s131
      %s153 = sphi 0, %s155
      %s156 = sphi 0, %s153
      %s157 = sphi 0, %s156
      %s173 = sphi 0, %s157
      %s179 = sphi 0, %s181
      %s182 = sphi 0, %s179
      %s183 = sphi 0, %s182
      %s199 = sphi 0, %s183
      %s205 = sphi 0, %s207
      %s208 = sphi 0, %s205
      %s209 = sphi 0, %s208
      %s225 = sphi 0, %s209
      %s231 = sphi 0, %s233
      %s234 = sphi 0, %s231
      %s235 = sphi 0, %s234
      %s251 = sphi 0, %s235
      %s255 = sphi 0, %s255
      %s257 = sphi 0, %s255
      %s258 = sphi 0, %s257
      %s272 = sphi 0, %s258
    $region4: #{tpu_custom_call.1} parent=1 // loop_header_branch
      %24 = sbr.rel (%p22) target = $region8
    $region5: #{tpu_custom_call.1} parent=1 // loop_body
      %s26 = ssub.s32 %s21, 1
      %s27 = ssub.s32 %s21, 2
      %s34 = sadd.s32 1, %s29
      %p35 = scmp.ge.s32.totalorder %s34, 1
      %s36 = scalar_select %p35, 0, %s34
      %s37 = sadd.s32 1, %s28
      %s38 = scalar_select %p35, %s37, %s28
      %p39 = scmp.ge.s32.totalorder %s38, 2
      %s40 = scalar_select %p39, 0, %s38
      %s42 = sadd.s32 %s41, 1
      %p45 = scmp.eq.s32.totalorder %s21, 1
      %p46 = scmp.ne.s32.totalorder %s41, %s43
      %p47 = scmp.eq.s32.totalorder %s21, 0
      %p48 = por %p46, %p47
      %p49 = scmp.ne.s32.totalorder %s41, %s43
      %p50 = scmp.eq.s32.totalorder %s26, 1
      %p51 = por %p49, %p50
      %p52 = scmp.ne.s32.totalorder %s43, %s44
      %p53 = scmp.eq.s32.totalorder %s26, 0
      %p54 = por %p52, %p53
      %p55 = scmp.ne.s32.totalorder %s43, %s44
      %p56 = scmp.eq.s32.totalorder %s27, 1
      %p57 = por %p55, %p56
      %p59 = scmp.ne.s32.totalorder %s44, %s58
      %p60 = scmp.eq.s32.totalorder %s27, 0
      %p61 = por %p59, %p60
      %s63 = sadd.s32 %s62, 1
      %p66 = scmp.eq.s32.totalorder %s21, 1
      %p67 = scmp.ne.s32.totalorder %s62, %s64
      %p68 = scmp.eq.s32.totalorder %s21, 0
      %p69 = por %p67, %p68
      %p70 = scmp.ne.s32.totalorder %s62, %s64
      %p71 = scmp.eq.s32.totalorder %s26, 1
      %p72 = por %p70, %p71
      %p73 = scmp.ne.s32.totalorder %s64, %s65
      %p74 = scmp.eq.s32.totalorder %s26, 0
      %p75 = por %p73, %p74
      %p76 = scmp.ne.s32.totalorder %s64, %s65
      %p77 = scmp.eq.s32.totalorder %s27, 1
      %p78 = por %p76, %p77
      %p80 = scmp.ne.s32.totalorder %s65, %s79
      %p81 = scmp.eq.s32.totalorder %s27, 0
      %p82 = por %p80, %p81
      %s84 = sadd.s32 %s83, 1
      %p87 = scmp.eq.s32.totalorder %s21, 1
      %p88 = scmp.ne.s32.totalorder %s83, %s85
      %p89 = scmp.eq.s32.totalorder %s21, 0
      %p90 = por %p88, %p89
      %p91 = scmp.ne.s32.totalorder %s83, %s85
      %p92 = scmp.eq.s32.totalorder %s26, 1
      %p93 = por %p91, %p92
      %p94 = scmp.ne.s32.totalorder %s85, %s86
      %p95 = scmp.eq.s32.totalorder %s26, 0
      %p96 = por %p94, %p95
      %p97 = scmp.ne.s32.totalorder %s85, %s86
      %p98 = scmp.eq.s32.totalorder %s27, 1
      %p99 = por %p97, %p98
      %p101 = scmp.ne.s32.totalorder %s86, %s100
      %p102 = scmp.eq.s32.totalorder %s27, 0
      %p103 = por %p101, %p102
      %s105 = sadd.s32 %s104, 1
      %p108 = scmp.eq.s32.totalorder %s21, 1
      %p109 = scmp.ne.s32.totalorder %s104, %s106
      %p110 = scmp.eq.s32.totalorder %s21, 0
      %p111 = por %p109, %p110
      %p112 = scmp.ne.s32.totalorder %s104, %s106
      %p113 = scmp.eq.s32.totalorder %s26, 1
      %p114 = por %p112, %p113
      %p115 = scmp.ne.s32.totalorder %s106, %s107
      %p116 = scmp.eq.s32.totalorder %s26, 0
      %p117 = por %p115, %p116
      %p118 = scmp.ne.s32.totalorder %s106, %s107
      %p119 = scmp.eq.s32.totalorder %s27, 1
      %p120 = por %p118, %p119
      %p122 = scmp.ne.s32.totalorder %s107, %s121
      %p123 = scmp.eq.s32.totalorder %s27, 0
      %p124 = por %p122, %p123
      %s125 = ssub.s32 %s29, %s36
      %p126 = scmp.eq.s32.totalorder %s125, 0
      %s128 = sadd.s32 %s127, 1
      %s129 = scalar_select %p126, %s127, %s128
      %p132 = pneg %p126
      %p133 = scmp.eq.s32.totalorder %s21, 1
      %p134 = por %p132, %p133
      %p135 = scmp.ne.s32.totalorder %s127, %s130
      %p136 = scmp.eq.s32.totalorder %s21, 0
      %p137 = por %p135, %p136
      %p138 = scmp.ne.s32.totalorder %s127, %s130
      %p139 = scmp.eq.s32.totalorder %s26, 1
      %p140 = por %p138, %p139
      %p141 = scmp.ne.s32.totalorder %s130, %s131
      %p142 = scmp.eq.s32.totalorder %s26, 0
      %p143 = por %p141, %p142
      %p144 = scmp.ne.s32.totalorder %s130, %s131
      %p145 = scmp.eq.s32.totalorder %s27, 1
      %p146 = por %p144, %p145
      %p148 = scmp.ne.s32.totalorder %s131, %s147
      %p149 = scmp.eq.s32.totalorder %s27, 0
      %p150 = por %p148, %p149
      %s151 = ssub.s32 %s28, %s40
      %p152 = scmp.eq.s32.totalorder %s151, 0
      %s154 = sadd.s32 %s153, 1
      %s155 = scalar_select %p152, %s153, %s154
      %p158 = pneg %p152
      %p159 = scmp.eq.s32.totalorder %s21, 1
      %p160 = por %p158, %p159
      %p161 = scmp.ne.s32.totalorder %s153, %s156
      %p162 = scmp.eq.s32.totalorder %s21, 0
      %p163 = por %p161, %p162
      %p164 = scmp.ne.s32.totalorder %s153, %s156
      %p165 = scmp.eq.s32.totalorder %s26, 1
      %p166 = por %p164, %p165
      %p167 = scmp.ne.s32.totalorder %s156, %s157
      %p168 = scmp.eq.s32.totalorder %s26, 0
      %p169 = por %p167, %p168
      %p170 = scmp.ne.s32.totalorder %s156, %s157
      %p171 = scmp.eq.s32.totalorder %s27, 1
      %p172 = por %p170, %p171
      %p174 = scmp.ne.s32.totalorder %s157, %s173
      %p175 = scmp.eq.s32.totalorder %s27, 0
      %p176 = por %p174, %p175
      %s177 = ssub.s32 %s28, %s40
      %p178 = scmp.eq.s32.totalorder %s177, 0
      %s180 = sadd.s32 %s179, 1
      %s181 = scalar_select %p178, %s179, %s180
      %p184 = pneg %p178
      %p185 = scmp.eq.s32.totalorder %s21, 1
      %p186 = por %p184, %p185
      %p187 = scmp.ne.s32.totalorder %s179, %s182
      %p188 = scmp.eq.s32.totalorder %s21, 0
      %p189 = por %p187, %p188
      %p190 = scmp.ne.s32.totalorder %s179, %s182
      %p191 = scmp.eq.s32.totalorder %s26, 1
      %p192 = por %p190, %p191
      %p193 = scmp.ne.s32.totalorder %s182, %s183
      %p194 = scmp.eq.s32.totalorder %s26, 0
      %p195 = por %p193, %p194
      %p196 = scmp.ne.s32.totalorder %s182, %s183
      %p197 = scmp.eq.s32.totalorder %s27, 1
      %p198 = por %p196, %p197
      %p200 = scmp.ne.s32.totalorder %s183, %s199
      %p201 = scmp.eq.s32.totalorder %s27, 0
      %p202 = por %p200, %p201
      %s203 = ssub.s32 %s28, %s40
      %p204 = scmp.eq.s32.totalorder %s203, 0
      %s206 = sadd.s32 %s205, 1
      %s207 = scalar_select %p204, %s205, %s206
      %p210 = pneg %p204
      %p211 = scmp.eq.s32.totalorder %s21, 1
      %p212 = por %p210, %p211
      %p213 = scmp.ne.s32.totalorder %s205, %s208
      %p214 = scmp.eq.s32.totalorder %s21, 0
      %p215 = por %p213, %p214
      %p216 = scmp.ne.s32.totalorder %s205, %s208
      %p217 = scmp.eq.s32.totalorder %s26, 1
      %p218 = por %p216, %p217
      %p219 = scmp.ne.s32.totalorder %s208, %s209
      %p220 = scmp.eq.s32.totalorder %s26, 0
      %p221 = por %p219, %p220
      %p222 = scmp.ne.s32.totalorder %s208, %s209
      %p223 = scmp.eq.s32.totalorder %s27, 1
      %p224 = por %p222, %p223
      %p226 = scmp.ne.s32.totalorder %s209, %s225
      %p227 = scmp.eq.s32.totalorder %s27, 0
      %p228 = por %p226, %p227
      %s229 = ssub.s32 %s28, %s40
      %p230 = scmp.eq.s32.totalorder %s229, 0
      %s232 = sadd.s32 %s231, 1
      %s233 = scalar_select %p230, %s231, %s232
      %p236 = pneg %p230
      %p237 = scmp.eq.s32.totalorder %s21, 1
      %p238 = por %p236, %p237
      %p239 = scmp.ne.s32.totalorder %s231, %s234
      %p240 = scmp.eq.s32.totalorder %s21, 0
      %p241 = por %p239, %p240
      %p242 = scmp.ne.s32.totalorder %s231, %s234
      %p243 = scmp.eq.s32.totalorder %s26, 1
      %p244 = por %p242, %p243
      %p245 = scmp.ne.s32.totalorder %s234, %s235
      %p246 = scmp.eq.s32.totalorder %s26, 0
      %p247 = por %p245, %p246
      %p248 = scmp.ne.s32.totalorder %s234, %s235
      %p249 = scmp.eq.s32.totalorder %s27, 1
      %p250 = por %p248, %p249
      %p252 = scmp.ne.s32.totalorder %s235, %s251
      %p253 = scmp.eq.s32.totalorder %s27, 0
      %p254 = por %p252, %p253
      %s256 = sadd.s32 %s255, 1
      %p259 = scmp.eq.s32.totalorder %s21, 1
      %p260 = scmp.ne.s32.totalorder %s255, %s257
      %p261 = scmp.eq.s32.totalorder %s21, 0
      %p262 = por %p260, %p261
      %p263 = scmp.ne.s32.totalorder %s255, %s257
      %p264 = scmp.eq.s32.totalorder %s26, 1
      %p265 = por %p263, %p264
      %p266 = scmp.ne.s32.totalorder %s257, %s258
      %p267 = scmp.eq.s32.totalorder %s26, 0
      %p268 = por %p266, %p267
      %p269 = scmp.ne.s32.totalorder %s257, %s258
      %p270 = scmp.eq.s32.totalorder %s27, 1
      %p271 = por %p269, %p270
      %p273 = scmp.ne.s32.totalorder %s258, %s272
      %p274 = scmp.eq.s32.totalorder %s27, 0
      %p275 = por %p273, %p274
      %p276 = scmp.le.s32.totalorder 1, %s21
      %p277 = scmp.lt.s32.totalorder %s21, 3
      %p278 = pnand %p276, %p277
      %p279 = pneg %p278
      // Predicated region
      $region9: #{tpu_custom_call.1} parent=5 // pred_check
        _
      $region10: #{tpu_custom_call.1} parent=5 // pred_check_branch
        %281 = sbr.rel (%p278) target = $region12
      $region11: #{tpu_custom_call.1} parent=5 // pred_region
        %s282 = ssub.s32 %s21, 1
        // Predicated region
        $region13: #{tpu_custom_call.1} parent=11 // pred_check
          %p283 = pneg %p54
        $region14: #{tpu_custom_call.1} parent=11 // pred_check_branch
          %285 = sbr.rel (%p283) target = $region16
        $region15: #{tpu_custom_call.1} parent=11 // pred_region
          _
        $region16: #{tpu_custom_call.1} parent=11 // pred_fallthru
          _
        // Predicated region
        $region17: #{tpu_custom_call.1} parent=11 // pred_check
          %p286 = pneg %p75
        $region18: #{tpu_custom_call.1} parent=11 // pred_check_branch
          %288 = sbr.rel (%p286) target = $region20
        $region19: #{tpu_custom_call.1} parent=11 // pred_region
          %s290 = ssub.s32 16, 16
          %291 = vsyncadd [#allocation11], %s290
          %s293 = sshll.u32 %s1, 4
          %s294 = int_to_ptr.vmem [resolvable:$true] %s293
          %296 = dma.vmem_to_smem %s294, 16, [#allocation7], [#allocation11]
        $region20: #{tpu_custom_call.1} parent=11 // pred_fallthru
          _
        // Predicated region
        $region21: #{tpu_custom_call.1} parent=11 // pred_check
          %p297 = pneg %p96
        $region22: #{tpu_custom_call.1} parent=11 // pred_check_branch
          %299 = sbr.rel (%p297) target = $region24
        $region23: #{tpu_custom_call.1} parent=11 // pred_region
          %s301 = ssub.s32 16, 16
          %302 = vsyncadd [#allocation10], %s301
          %305 = dma.hbm_to_smem %s2, 16, [#allocation12], [#allocation10]
        $region24: #{tpu_custom_call.1} parent=11 // pred_fallthru
          _
        // Predicated region
        $region25: #{tpu_custom_call.1} parent=11 // pred_check
          %p306 = pneg %p117
        $region26: #{tpu_custom_call.1} parent=11 // pred_check_branch
          %308 = sbr.rel (%p306) target = $region28
        $region27: #{tpu_custom_call.1} parent=11 // pred_region
          %s310 = ssub.s32 512, 512
          %311 = vsyncadd [#allocation8], %s310
          %s312 = sshll.u32 [#allocation13], 4
          %s313 = int_to_ptr.vmem [resolvable:$true] %s312
          %318 = dma.hbm_to_vmem [thread:$0]  %s3, 512, %s313, [#allocation8], 128, 128, 8
        $region28: #{tpu_custom_call.1} parent=11 // pred_fallthru
          _
        // Predicated region
        $region29: #{tpu_custom_call.1} parent=11 // pred_check
          %p319 = pneg %p143
        $region30: #{tpu_custom_call.1} parent=11 // pred_check_branch
          %321 = sbr.rel (%p319) target = $region32
        $region31: #{tpu_custom_call.1} parent=11 // pred_region
          %s322 = smul.u32 4, %s31
          %s324 = ssub.s32 256, 256
          %325 = vsyncadd [#allocation15], %s324
          %s326 = smul.addr %s322, 64
          %s327 = scalar_lea.hbm %s4, %s326
          %s328 = sshll.u32 [#allocation14], 4
          %s329 = int_to_ptr.vmem [resolvable:$true] %s328
          %334 = dma.hbm_to_vmem [thread:$0]  %s327, 256, %s329, [#allocation15], 64, 64, 4
        $region32: #{tpu_custom_call.1} parent=11 // pred_fallthru
          _
      $region12: #{tpu_custom_call.1} parent=5 // pred_fallthru
        _
      %p335 = scmp.lt.s32.totalorder %s21, 2
      // Predicated region
      $region33: #{tpu_custom_call.1} parent=5 // pred_check
        %p336 = pneg %p335
      $region34: #{tpu_custom_call.1} parent=5 // pred_check_branch
        %338 = sbr.rel (%p336) target = $region36
      $region35: #{tpu_custom_call.1} parent=5 // pred_region
        // Predicated region
        $region37: #{tpu_custom_call.1} parent=35 // pred_check
          %p339 = pneg %p163
        $region38: #{tpu_custom_call.1} parent=35 // pred_check_branch
          %341 = sbr.rel (%p339) target = $region40
        $region39: #{tpu_custom_call.1} parent=35 // pred_region
          %s342 = sand.u32 %s21, 1
          %s343 = scalar_lea.sflag [#allocation8], %s342
          %s344 = sand.u32 %s153, 1
          %s345 = smul.addr %s344, 64
          %s346 = scalar_lea.vmem [#allocation16], %s345
          %s348 = ssub.s32 1024, 1024
          %349 = vsyncadd %s343, %s348
          %s350 = smul.addr %s28, 16
          %s351 = smul.addr %s350, 64
          %s352 = scalar_lea.hbm %s5, %s351
          %s353 = sshll.u32 %s346, 4
          %s354 = int_to_ptr.vmem [resolvable:$true] %s353
          %359 = dma.hbm_to_vmem [thread:$0]  %s352, 1024, %s354, %s343, 64, 64, 4
        $region40: #{tpu_custom_call.1} parent=35 // pred_fallthru
          _
        // Predicated region
        $region41: #{tpu_custom_call.1} parent=35 // pred_check
          %p360 = pneg %p189
        $region42: #{tpu_custom_call.1} parent=35 // pred_check_branch
          %362 = sbr.rel (%p360) target = $region44
        $region43: #{tpu_custom_call.1} parent=35 // pred_region
          %p363 = scmp.lt.s32.totalorder %s28, 1
          %s364 = scalar_select %p363, %s28, 1
          %s365 = scalar_lea.vmem %s6, %s364
        $region44: #{tpu_custom_call.1} parent=35 // pred_fallthru
          _
        // Predicated region
        $region45: #{tpu_custom_call.1} parent=35 // pred_check
          %p366 = pneg %p215
        $region46: #{tpu_custom_call.1} parent=35 // pred_check_branch
          %368 = sbr.rel (%p366) target = $region48
        $region47: #{tpu_custom_call.1} parent=35 // pred_region
          %p369 = scmp.lt.s32.totalorder %s28, 1
          %s370 = scalar_select %p369, %s28, 1
          %s371 = scalar_lea.vmem %s7, %s370
        $region48: #{tpu_custom_call.1} parent=35 // pred_fallthru
          _
        // Predicated region
        $region49: #{tpu_custom_call.1} parent=35 // pred_check
          %p372 = pneg %p241
        $region50: #{tpu_custom_call.1} parent=35 // pred_check_branch
          %374 = sbr.rel (%p372) target = $region52
        $region51: #{tpu_custom_call.1} parent=35 // pred_region
          %p375 = scmp.lt.s32.totalorder %s28, 1
          %s376 = scalar_select %p375, %s28, 1
          %s377 = scalar_lea.vmem %s8, %s376
        $region52: #{tpu_custom_call.1} parent=35 // pred_fallthru
          _
      $region36: #{tpu_custom_call.1} parent=5 // pred_fallthru
        _
      %p378 = scmp.le.s32.totalorder 1, %s21
      %p379 = scmp.lt.s32.totalorder %s21, 3
      %p380 = pnand %p378, %p379
      %p381 = pneg %p380
      // Predicated region
      $region53: #{tpu_custom_call.1} parent=5 // pred_check
        _
      $region54: #{tpu_custom_call.1} parent=5 // pred_check_branch
        %383 = sbr.rel (%p380) target = $region56
      $region55: #{tpu_custom_call.1} parent=5 // pred_region
        %s384 = ssub.s32 %s21, 1
        // Predicated region
        $region57: #{tpu_custom_call.1} parent=55 // pred_check
          %p385 = pneg %p75
        $region58: #{tpu_custom_call.1} parent=55 // pred_check_branch
          %387 = sbr.rel (%p385) target = $region60
        $region59: #{tpu_custom_call.1} parent=55 // pred_region
          %388 = dma.done [#allocation11], 16
        $region60: #{tpu_custom_call.1} parent=55 // pred_fallthru
          _
        // Predicated region
        $region61: #{tpu_custom_call.1} parent=55 // pred_check
          %p389 = pneg %p96
        $region62: #{tpu_custom_call.1} parent=55 // pred_check_branch
          %391 = sbr.rel (%p389) target = $region64
        $region63: #{tpu_custom_call.1} parent=55 // pred_region
          %392 = dma.done [#allocation10], 16
        $region64: #{tpu_custom_call.1} parent=55 // pred_fallthru
          _
        // Predicated region
        $region65: #{tpu_custom_call.1} parent=55 // pred_check
          %p393 = pneg %p117
        $region66: #{tpu_custom_call.1} parent=55 // pred_check_branch
          %395 = sbr.rel (%p393) target = $region68
        $region67: #{tpu_custom_call.1} parent=55 // pred_region
          %396 = dma.done [#allocation8], 512
        $region68: #{tpu_custom_call.1} parent=55 // pred_fallthru
          _
        // Predicated region
        $region69: #{tpu_custom_call.1} parent=55 // pred_check
          %p397 = pneg %p143
        $region70: #{tpu_custom_call.1} parent=55 // pred_check_branch
          %399 = sbr.rel (%p397) target = $region72
        $region71: #{tpu_custom_call.1} parent=55 // pred_region
          %400 = dma.done [#allocation15], 256
        $region72: #{tpu_custom_call.1} parent=55 // pred_fallthru
          _
        %s401 = sand.u32 %s26, 1
        %s402 = scalar_lea.sflag [#allocation8], %s401
        %s403 = sand.u32 %s156, 1
        %s404 = smul.addr %s403, 64
        %s405 = scalar_lea.vmem [#allocation16], %s404
        // Predicated region
        $region73: #{tpu_custom_call.1} parent=55 // pred_check
          %p406 = pneg %p169
        $region74: #{tpu_custom_call.1} parent=55 // pred_check_branch
          %408 = sbr.rel (%p406) target = $region76
        $region75: #{tpu_custom_call.1} parent=55 // pred_region
          %409 = dma.done %s402, 1024
        $region76: #{tpu_custom_call.1} parent=55 // pred_fallthru
          _
        %410 = sfence
        %p411 = pneg %p54
        %p412 = pneg %p51
        %p413 = pneg %p75
        %p414 = pneg %p72
        %p415 = pneg %p96
        %p416 = pneg %p93
        %p417 = pneg %p117
        %p418 = pneg %p114
        %p419 = pneg %p143
        %p420 = pneg %p140
        %s421 = sand.u32 %s26, 1
        %s422 = scalar_lea.sflag [#allocation8], %s421
        %s423 = sand.u32 %s156, 1
        %s424 = smul.addr %s423, 64
        %s425 = scalar_lea.vmem [#allocation16], %s424
        %p426 = pneg %p169
        %p427 = pneg %p166
        %p428 = scmp.lt.s32.totalorder %s30, 1
        %s429 = scalar_select %p428, %s30, 1
        %s430 = scalar_lea.vmem %s6, %s429
        %p431 = pneg %p195
        %p432 = pneg %p192
        %p433 = scmp.lt.s32.totalorder %s30, 1
        %s434 = scalar_select %p433, %s30, 1
        %s435 = scalar_lea.vmem %s7, %s434
        %p436 = pneg %p221
        %p437 = pneg %p218
        %p438 = scmp.lt.s32.totalorder %s30, 1
        %s439 = scalar_select %p438, %s30, 1
        %s440 = scalar_lea.vmem %s8, %s439
        %p441 = pneg %p247
        %p442 = pneg %p244
        %p443 = pneg %p268
        %p444 = pneg %p265
        %s445 = smul.u32 4, %s31
        %p446 = scmp.lt.s32.totalorder %s30, 1
        %s447 = scalar_select %p446, %s30, 1
        %s448 = scalar_lea.vmem %s6, %s447
        %p449 = scmp.lt.s32.totalorder %s30, 1
        %s450 = scalar_select %p449, %s30, 1
        %s451 = scalar_lea.vmem %s7, %s450
        %p452 = scmp.lt.s32.totalorder %s30, 1
        %s453 = scalar_select %p452, %s30, 1
        %s454 = scalar_lea.vmem %s8, %s453
        %p456 = scmp.eq.s32.totalorder %s31, 0
        // Predicated region
        $region77: #{tpu_custom_call.1} parent=55 // pred_check
          %p457 = pneg %p456
        $region78: #{tpu_custom_call.1} parent=55 // pred_check_branch
          %459 = sbr.rel (%p457) target = $region80
        $region79: #{tpu_custom_call.1} parent=55 // pred_region
          %vm460 = vcmask 0
          %461 = vst.msk [vmem:[#allocation4] sm:$0x1] %vm460, 0.0
          %462 = vst.msk [vmem:[#allocation5] sm:$0x1] %vm460, 0.0
          %p463 = scmp.eq.s32.totalorder %s30, 0
          // Predicated region
          $region81: #{tpu_custom_call.1} parent=79 // pred_check
            %p464 = pneg %p463
          $region82: #{tpu_custom_call.1} parent=79 // pred_check_branch
            %466 = sbr.rel (%p464) target = $region84
          $region83: #{tpu_custom_call.1} parent=79 // pred_region
            %v467 = vld [vmem:[#allocation13] sm:$0xff]
            %v468 = vld [vmem:[#allocation13 + $0x8] sm:$0xff]
            %v469 = vld [vmem:[#allocation13 + $0x10] sm:$0xff]
            %v470 = vld [vmem:[#allocation13 + $0x18] sm:$0xff]
            %471 = vst [vmem:[#allocation17] sm:$0xff] %v467
            %472 = vst [vmem:[#allocation17 + $0x8] sm:$0xff] %v468
            %473 = vst [vmem:[#allocation17 + $0x10] sm:$0xff] %v469
            %474 = vst [vmem:[#allocation17 + $0x18] sm:$0xff] %v470
          $region84: #{tpu_custom_call.1} parent=79 // pred_fallthru
            _
          %v475 = vld [vmem:[#allocation17] sm:$0xff]
          %v476 = vld [vmem:[#allocation17 + $0x8] sm:$0xff]
          %v477 = vld [vmem:[#allocation17 + $0x10] sm:$0xff]
          %v478 = vld [vmem:[#allocation17 + $0x18] sm:$0xff]
          %v479 = vpack.c.bf16 %v476, %v475
          %v480 = vpack.c.bf16 %v478, %v477
          %v481 = vld [vmem:[%s405] sm:$0xf]
          %v482 = vld [vmem:[%s405 + $0x4] sm:$0xf]
          %v483 = vld [vmem:[%s405 + $0x8] sm:$0xf]
          %v484 = vld [vmem:[%s405 + $0xc] sm:$0xf]
          %v485 = vld [vmem:[%s405 + $0x10] sm:$0xf]
          %v486 = vld [vmem:[%s405 + $0x14] sm:$0xf]
          %v487 = vld [vmem:[%s405 + $0x18] sm:$0xf]
          %v488 = vld [vmem:[%s405 + $0x1c] sm:$0xf]
          %v489 = vld [vmem:[%s405 + $0x20] sm:$0xf]
          %v490 = vld [vmem:[%s405 + $0x24] sm:$0xf]
          %v491 = vld [vmem:[%s405 + $0x28] sm:$0xf]
          %v492 = vld [vmem:[%s405 + $0x2c] sm:$0xf]
          %v493 = vld [vmem:[%s405 + $0x30] sm:$0xf]
          %v494 = vld [vmem:[%s405 + $0x34] sm:$0xf]
          %v495 = vld [vmem:[%s405 + $0x38] sm:$0xf]
          %v496 = vld [vmem:[%s405 + $0x3c] sm:$0xf]
          %v513 = vunpack.c.l.b16 %v481
          %v514 = vunpack.c.l.b16 %v482
          %v515 = vunpack.c.l.b16 %v483
          %v516 = vunpack.c.l.b16 %v484
          %v517 = vunpack.c.l.b16 %v485
          %v518 = vunpack.c.l.b16 %v486
          %v519 = vunpack.c.l.b16 %v487
          %v520 = vunpack.c.l.b16 %v488
          %v521 = vunpack.c.l.b16 %v489
          %v522 = vunpack.c.l.b16 %v490
          %v523 = vunpack.c.l.b16 %v491
          %v524 = vunpack.c.l.b16 %v492
          %v525 = vunpack.c.l.b16 %v493
          %v526 = vunpack.c.l.b16 %v494
          %v527 = vunpack.c.l.b16 %v495
          %v528 = vunpack.c.l.b16 %v496
          %v529 = vpack.c.b16 %v514, %v513
          %v530 = vpack.c.b16 %v516, %v515
          %v531 = vpack.c.b16 %v518, %v517
          %v532 = vpack.c.b16 %v520, %v519
          %v533 = vpack.c.b16 %v522, %v521
          %v534 = vpack.c.b16 %v524, %v523
          %v535 = vpack.c.b16 %v526, %v525
          %v536 = vpack.c.b16 %v528, %v527
          %545 = vmatprep.subr.bf16.mxu0 0
          %546 = vmatpush1.bf16.msra.mxu0 %v529
          %547 = vmatprep.subr.bf16.mxu0 0
          %548 = vmatpush1.bf16.msra.mxu0 %v530
          %549 = vmatprep.subr.bf16.mxu0 0
          %550 = vmatpush1.bf16.msra.mxu0 %v531
          %551 = vmatprep.subr.bf16.mxu0 0
          %552 = vmatpush1.bf16.msra.mxu0 %v532
          %553 = vmatprep.subr.bf16.mxu0 0
          %554 = vmatpush1.bf16.msra.mxu0 %v533
          %555 = vmatprep.subr.bf16.mxu0 0
          %556 = vmatpush1.bf16.msra.mxu0 %v534
          %557 = vmatprep.subr.bf16.mxu0 0
          %558 = vmatpush1.bf16.msra.mxu0 %v535
          %559 = vmatprep.subr.bf16.mxu0 0
          %560 = vmatpush1.bf16.msra.mxu0 %v536
          %561 = vmatprep.subr.bf16.mxu0 0
          %562 = vmatpush1.bf16.msra.mxu0 0
          %563 = vmatprep.subr.bf16.mxu0 0
          %564 = vmatpush1.bf16.msra.mxu0 0
          %565 = vmatprep.subr.bf16.mxu0 0
          %566 = vmatpush1.bf16.msra.mxu0 0
          %567 = vmatprep.subr.bf16.mxu0 0
          %568 = vmatpush1.bf16.msra.mxu0 0
          %569 = vmatprep.subr.bf16.mxu0 0
          %570 = vmatpush1.bf16.msra.mxu0 0
          %571 = vmatprep.subr.bf16.mxu0 0
          %572 = vmatpush1.bf16.msra.mxu0 0
          %573 = vmatprep.subr.bf16.mxu0 0
          %574 = vmatpush1.bf16.msra.mxu0 0
          %575 = vmatprep.subr.bf16.mxu0 0
          %576 = vmatpush1.bf16.msra.mxu0 0
          %577 = vmatprep.mubr.bf16.mxu0 0
          %578 = vmatmul.mubr.bf16.gmra.mrb[0].mxu0 %v479
          %v579 = vpop.f32.mrb[0].mxu0
          %v580 = vadd.f32 0.0, %v579
          %v581 = vpop.f32.mrb[0].mxu0
          %v582 = vpop.f32.mrb[0].mxu0
          %v583 = vadd.f32 0.0, %v582
          %v584 = vpop.f32.mrb[0].mxu0
          %585 = vmatprep.mubr.bf16.mxu0 0
          %586 = vmatmul.mubr.bf16.gmra.mrb[0].mxu0 %v480
          %v587 = vpop.f32.mrb[0].mxu0
          %v588 = vadd.f32 0.0, %v587
          %v589 = vpop.f32.mrb[0].mxu0
          %v590 = vpop.f32.mrb[0].mxu0
          %v591 = vadd.f32 0.0, %v590
          %v592 = vpop.f32.mrb[0].mxu0
          %593 = vdwg.mxu0
          %v594 = vpack.c.bf16 %v583, %v580
          %v595 = vpack.c.bf16 %v591, %v588
          %596 = vst [vmem:[#allocation2] sm:$0xff] %v594
          %597 = vst [vmem:[#allocation2 + $0x8] sm:$0xff] %v595
        $region80: #{tpu_custom_call.1} parent=55 // pred_fallthru
          _
        %s598 = smul.u32 %s31, 32
        %v599 = vld [vmem:[#allocation14] sm:$0xf]
        %v600 = vld [vmem:[#allocation14 + $0x4] sm:$0xf]
        %v601 = vld [vmem:[#allocation14 + $0x8] sm:$0xf]
        %v602 = vld [vmem:[#allocation14 + $0xc] sm:$0xf]
        %v603 = vld [vmem:[#allocation2] sm:$0xff]
        %v604 = vld [vmem:[#allocation2 + $0x8] sm:$0xff]
        %v605 = vld [vmem:[%s448] sm:$0x1]
        %v607 = vlaneseq
        %v608 = vshrl.u32 %v607, 7
        %v609 = vsub.s32 0, %v608
        %v610 = vrot.slane %v605, %v609
        %v616 = vunpack.c.l.b16 %v599
        %v617 = vunpack.c.l.b16 %v600
        %v618 = vunpack.c.l.b16 %v601
        %v619 = vunpack.c.l.b16 %v602
        %v620 = vpack.c.b16 %v617, %v616
        %v621 = vpack.c.b16 %v619, %v618
        %vm622 = vcmask 261120
        %v624 = vsel %vm622, %v620, 0
        %v627 = vsel %vm622, %v621, 0
        %629 = vmatprep.subr.bf16.mxu0 0
        %630 = vmatpush1.bf16.msra.mxu0 %v603
        %631 = vmatprep.subr.bf16.mxu0 0
        %632 = vmatpush1.bf16.msra.mxu0 %v604
        %633 = vmatprep.subr.bf16.mxu0 0
        %634 = vmatpush1.bf16.msra.mxu0 0
        %635 = vmatprep.subr.bf16.mxu0 0
        %636 = vmatpush1.bf16.msra.mxu0 0
        %637 = vmatprep.subr.bf16.mxu0 0
        %638 = vmatpush1.bf16.msra.mxu0 0
        %639 = vmatprep.subr.bf16.mxu0 0
        %640 = vmatpush1.bf16.msra.mxu0 0
        %641 = vmatprep.subr.bf16.mxu0 0
        %642 = vmatpush1.bf16.msra.mxu0 0
        %643 = vmatprep.subr.bf16.mxu0 0
        %644 = vmatpush1.bf16.msra.mxu0 0
        %645 = vmatprep.subr.bf16.mxu0 0
        %646 = vmatpush1.bf16.msra.mxu0 0
        %647 = vmatprep.subr.bf16.mxu0 0
        %648 = vmatpush1.bf16.msra.mxu0 0
        %649 = vmatprep.subr.bf16.mxu0 0
        %650 = vmatpush1.bf16.msra.mxu0 0
        %651 = vmatprep.subr.bf16.mxu0 0
        %652 = vmatpush1.bf16.msra.mxu0 0
        %653 = vmatprep.subr.bf16.mxu0 0
        %654 = vmatpush1.bf16.msra.mxu0 0
        %655 = vmatprep.subr.bf16.mxu0 0
        %656 = vmatpush1.bf16.msra.mxu0 0
        %657 = vmatprep.subr.bf16.mxu0 0
        %658 = vmatpush1.bf16.msra.mxu0 0
        %659 = vmatprep.subr.bf16.mxu0 0
        %660 = vmatpush1.bf16.msra.mxu0 0
        %661 = vmatprep.mubr.bf16.mxu0 0
        %662 = vmatmul.mubr.bf16.gmra.mrb[0].mxu0 %v624
        %v663 = vpop.f32.mrb[0].mxu0
        %v664 = vadd.f32 %v610, %v663
        %v665 = vpop.f32.mrb[0].mxu0
        %v666 = vpop.f32.mrb[0].mxu0
        %v667 = vadd.f32 %v610, %v666
        %v668 = vpop.f32.mrb[0].mxu0
        %669 = vmatprep.mubr.bf16.mxu0 0
        %670 = vmatmul.mubr.bf16.gmra.mrb[0].mxu0 %v627
        %v671 = vpop.f32.mrb[0].mxu0
        %v672 = vadd.f32 %v610, %v671
        %v673 = vpop.f32.mrb[0].mxu0
        %v674 = vpop.f32.mrb[0].mxu0
        %v675 = vadd.f32 %v610, %v674
        %v676 = vpop.f32.mrb[0].mxu0
        %677 = vdwg.mxu0
        %s678 = scalar_lea.vmem [#allocation3], %s598
        %679 = vst [vmem:[%s678] sm:$0xff] %v664
        %680 = vst [vmem:[%s678 + $0x8] sm:$0xff] %v667
        %681 = vst [vmem:[%s678 + $0x10] sm:$0xff] %v672
        %682 = vst [vmem:[%s678 + $0x18] sm:$0xff] %v675
        %v683 = vlaneseq
        %v684 = vshrl.u32 %v683, 7
        %v685 = vadd.s32 %v684, 8
        %v686 = vadd.s32 %v684, 16
        %v687 = vadd.s32 %v684, 24
        %v688 = vstv %s598
        %v689 = vadd.s32 %v684, %v688
        %v690 = vadd.s32 %v685, %v688
        %v691 = vadd.s32 %v686, %v688
        %v692 = vadd.s32 %v687, %v688
        %s693 = sld [smem:[#allocation6]]
        %v694 = vstv %s693
        %vm695 = vcmp.lt.s32.totalorder %v689, %v694
        %vm696 = vcmp.lt.s32.totalorder %v690, %v694
        %vm697 = vcmp.lt.s32.totalorder %v691, %v694
        %vm698 = vcmp.lt.s32.totalorder %v692, %v694
        %v699 = vsel %vm695, %v664, 0.0
        %v700 = vsel %vm696, %v667, 0.0
        %v701 = vsel %vm697, %v672, 0.0
        %v702 = vsel %vm698, %v675, 0.0
        %v703 = vld [vmem:[#allocation4] sm:$0x1]
        %v704 = vadd.f32 %v699, %v700
        %v705 = vadd.f32 %v704, %v701
        %v706 = vadd.f32 %v705, %v702
        %707 = vadd.xlane.f32.xlu0 %v706
        %v708 = vpop.xlane.xlu0 %707
        %v709 = vrot.slane %v708, 4
        %v710 = vadd.f32 %v708, %v709
        %v711 = vrot.slane %v710, 2
        %v712 = vadd.f32 %v710, %v711
        %v713 = vrot.slane %v712, 1
        %v714 = vadd.f32 %v712, %v713
        %s715 = vtos %v714
        %v716 = vstv %s715
        %v717 = vadd.f32 %v703, %v716
        %vm718 = vcmask 0
        %719 = vst.msk [vmem:[#allocation4] sm:$0x1] %vm718, %v717
        %v720 = vld [vmem:[#allocation5] sm:$0x1]
        %v721 = vmul.f32 %v699, %v699
        %v722 = vmul.f32 %v700, %v700
        %v723 = vmul.f32 %v701, %v701
        %v724 = vmul.f32 %v702, %v702
        %v725 = vadd.f32 %v721, %v722
        %v726 = vadd.f32 %v725, %v723
        %v727 = vadd.f32 %v726, %v724
        %728 = vadd.xlane.f32.xlu0 %v727
        %v729 = vpop.xlane.xlu0 %728
        %v730 = vrot.slane %v729, 4
        %v731 = vadd.f32 %v729, %v730
        %v732 = vrot.slane %v731, 2
        %v733 = vadd.f32 %v731, %v732
        %v734 = vrot.slane %v733, 1
        %v735 = vadd.f32 %v733, %v734
        %s736 = vtos %v735
        %v737 = vstv %s736
        %v738 = vadd.f32 %v720, %v737
        %739 = vst.msk [vmem:[#allocation5] sm:$0x1] %vm718, %v738
        // Predicated region
        $region85: #{tpu_custom_call.1} parent=55 // pred_check
          %p740 = pneg %p456
        $region86: #{tpu_custom_call.1} parent=55 // pred_check_branch
          %742 = sbr.rel (%p740) target = $region88
        $region87: #{tpu_custom_call.1} parent=55 // pred_region
          %s743 = sld [smem:[#allocation6]]
          %s744 = sld [smem:[#allocation7 + %s30]]
          %s745 = smul.u32 %s743, %s744
          %s746 = scvt.s32.f32 %s745
          %v747 = vld [vmem:[#allocation4] sm:$0x1]
          %v748 = vstv %s746
          %v749 = vrcp.pop %v748
          %v750 = vmul.f32 %v747, %v749
          %v751 = vld [vmem:[#allocation5] sm:$0x1]
          %v752 = vmul.f32 %v751, %v749
          %v753 = vmul.f32 %v750, %v750
          %v754 = vsub.f32 %v752, %v753
          %v755 = vmax.f32 %v754, 0.0
          %v756 = vrsqrt.pop %v755
          %v757 = vmul.f32 %v755, %v756
          %vm758 = vcmp.eq.f32.partialorder %v755, inf
          %v759 = vsel %vm758, %v755, %v757
          %vm760 = vcmp.eq.f32.partialorder %v755, 0.0
          %v761 = vand.u32 %v755, 2147483648
          %v762 = vsel %vm760, %v761, %v759
          %v763 = vadd.f32 %v762, 1e-05
          %v764 = vrcp.pop %v763
          %v765 = vmul.f32 1.0, %v764
          %v766 = vld [vmem:[#allocation3] sm:$0xff]
          %v767 = vld [vmem:[#allocation3 + $0x8] sm:$0xff]
          %v768 = vld [vmem:[#allocation3 + $0x10] sm:$0xff]
          %v769 = vld [vmem:[#allocation3 + $0x18] sm:$0xff]
          %v771 = vlaneseq
          %v772 = vshrl.u32 %v771, 7
          %v773 = vsub.s32 0, %v772
          %v774 = vrot.slane %v750, %v773
          %775 = vset.pattern.permute.xlu0 0
          %776 = vperm.xlu0 %775, %v774
          %v777 = vpop.permute.xlu0 %776
          %v779 = vsub.f32 %v766, %v777
          %v780 = vsub.f32 %v767, %v777
          %v781 = vsub.f32 %v768, %v777
          %v782 = vsub.f32 %v769, %v777
          %v784 = vlaneseq
          %v785 = vshrl.u32 %v784, 7
          %v786 = vsub.s32 0, %v785
          %v787 = vrot.slane %v765, %v786
          %788 = vset.pattern.permute.xlu0 0
          %789 = vperm.xlu0 %788, %v787
          %v790 = vpop.permute.xlu0 %789
          %v792 = vmul.f32 %v779, %v790
          %v793 = vmul.f32 %v780, %v790
          %v794 = vmul.f32 %v781, %v790
          %v795 = vmul.f32 %v782, %v790
          %v796 = vld [vmem:[%s451] sm:$0x1]
          %v798 = vlaneseq
          %v799 = vshrl.u32 %v798, 7
          %v800 = vsub.s32 0, %v799
          %v801 = vrot.slane %v796, %v800
          %v803 = vmul.f32 %v792, %v801
          %v804 = vmul.f32 %v793, %v801
          %v805 = vmul.f32 %v794, %v801
          %v806 = vmul.f32 %v795, %v801
          %v807 = vld [vmem:[%s454] sm:$0x1]
          %v809 = vlaneseq
          %v810 = vshrl.u32 %v809, 7
          %v811 = vsub.s32 0, %v810
          %v812 = vrot.slane %v807, %v811
          %v814 = vadd.f32 %v803, %v812
          %v815 = vadd.f32 %v804, %v812
          %v816 = vadd.f32 %v805, %v812
          %v817 = vadd.f32 %v806, %v812
          %s818 = sld [smem:[#allocation12 + %s30]]
          %vm819 = vcmp.gt.f32.partialorder %v814, 0.0
          %vm820 = vcmp.gt.f32.partialorder %v815, 0.0
          %vm821 = vcmp.gt.f32.partialorder %v816, 0.0
          %vm822 = vcmp.gt.f32.partialorder %v817, 0.0
          %v823 = vstv %s818
          %v824 = vmul.f32 %v823, %v814
          %v825 = vmul.f32 %v823, %v815
          %v826 = vmul.f32 %v823, %v816
          %v827 = vmul.f32 %v823, %v817
          %v828 = vsel %vm819, %v814, %v824
          %v829 = vsel %vm820, %v815, %v825
          %v830 = vsel %vm821, %v816, %v826
          %v831 = vsel %vm822, %v817, %v827
          %832 = vst [vmem:[#allocation17] sm:$0xff] %v828
          %833 = vst [vmem:[#allocation17 + $0x8] sm:$0xff] %v829
          %834 = vst [vmem:[#allocation17 + $0x10] sm:$0xff] %v830
          %835 = vst [vmem:[#allocation17 + $0x18] sm:$0xff] %v831
        $region88: #{tpu_custom_call.1} parent=55 // pred_fallthru
          _
        // Predicated region
        $region89: #{tpu_custom_call.1} parent=55 // pred_check
          %p836 = pneg %p265
        $region90: #{tpu_custom_call.1} parent=55 // pred_check_branch
          %838 = sbr.rel (%p836) target = $region92
        $region91: #{tpu_custom_call.1} parent=55 // pred_region
          %s840 = ssub.s32 512, 512
          %841 = vsyncadd [#allocation9], %s840
          %s842 = sshll.u32 [#allocation17], 4
          %s843 = int_to_ptr.vmem [resolvable:$true] %s842
          %848 = dma.vmem_to_hbm [thread:$0]  %s843, 512, %s9, [#allocation9], 128, 128, 8
        $region92: #{tpu_custom_call.1} parent=55 // pred_fallthru
          _
        // Predicated region
        $region93: #{tpu_custom_call.1} parent=55 // pred_check
          %p849 = pneg %p265
        $region94: #{tpu_custom_call.1} parent=55 // pred_check_branch
          %851 = sbr.rel (%p849) target = $region96
        $region95: #{tpu_custom_call.1} parent=55 // pred_region
          %852 = dma.done [#allocation9], 512
        $region96: #{tpu_custom_call.1} parent=55 // pred_fallthru
          _
      $region56: #{tpu_custom_call.1} parent=5 // pred_fallthru
        _
      %p853 = scmp.le.s32.totalorder 2, %s21
      // Predicated region
      $region97: #{tpu_custom_call.1} parent=5 // pred_check
        %p854 = pneg %p853
      $region98: #{tpu_custom_call.1} parent=5 // pred_check_branch
        %856 = sbr.rel (%p854) target = $region100
      $region99: #{tpu_custom_call.1} parent=5 // pred_region
        %s857 = ssub.s32 %s21, 2
      $region100: #{tpu_custom_call.1} parent=5 // pred_fallthru
        _
    $region6: #{tpu_custom_call.1} parent=1 // loop_footer
      %s25 = sadd.s32 1, %s21
    $region7: #{tpu_custom_call.1} parent=1 // loop_footer_branch
      %20 = sbr.rel target = $region3
    $region8: #{tpu_custom_call.1} parent=1 // loop_exit
      _
    %858 = vsyncpa [#allocation8], 1
    %s859 = scalar_lea.sflag [#allocation8], 1
    %860 = vsyncpa %s859, 1
    %861 = vsyncpa [#allocation15], 1
    %862 = vsyncpa [#allocation9], 1
    %s863 = scalar_lea.sflag [#allocation9], 1
    %864 = vsyncpa %s863, 1
    %865 = vsyncpa [#allocation10], 1
    %s866 = scalar_lea.sflag [#allocation10], 1
    %867 = vsyncpa %s866, 1
    %868 = vsyncpa [#allocation11], 1
    %s869 = scalar_lea.sflag [#allocation11], 1
    %870 = vsyncpa %s869, 1

</llo_original>
